<compile_context>
chip_gen: v7x
topology: tpu7x:2x2x1
jax: 0.10.0
libtpu: 0.0.40
codegen_flags: <defaults>
</compile_context>

<pallas_src>
import functools

import jax
import jax.numpy as jnp
from jax.experimental import pallas as pl
from jax.experimental.pallas import tpu as pltpu

_HALO = 128  # lane-aligned right-halo width (covers K - 1 taps, K <= 129)


def _round_up(a, b):
    return (a + b - 1) // b * b


def _conv_bn_relu_kernel(*refs, K, fuse_taps):
    """One (C_out, TL) output tile: conv taps (MXU) + BN shift + ReLU (f32 epilogue)."""
    if K > 1:
        xm_ref, xh_ref, w_ref, shift_ref, o_ref = refs
    else:
        xm_ref, w_ref, shift_ref, o_ref = refs
    C_out, TL = o_ref.shape

    x = xm_ref[...]                                         # (C_in, TL) bf16
    if K > 1:
        x = jnp.concatenate([x, xh_ref[...]], axis=-1)      # (C_in, TL + HALO)

    if fuse_taps:
        # Single wide-contraction matmul: (C_out, K*C_in) x (K*C_in, TL).
        if K > 1:
            taps = [jax.lax.slice_in_dim(x, k, k + TL, axis=1) for k in range(K)]
            rhs = jnp.concatenate(taps, axis=0)             # (K*C_in, TL)
        else:
            rhs = x
        acc = jnp.dot(w_ref[...], rhs, preferred_element_type=jnp.float32)
    else:
        # K separate MXU matmuls accumulated in f32 (large C_in already fills the MXU).
        acc = jnp.zeros((C_out, TL), jnp.float32)
        for k in range(K):  # K is a small static constant: unrolled taps
            win = jax.lax.slice_in_dim(x, k, k + TL, axis=1)     # (C_in, TL)
            acc = acc + jnp.dot(w_ref[k], win, preferred_element_type=jnp.float32)

    y = acc + shift_ref[...]                                 # (C_out, 1) bcast over lanes
    o_ref[...] = jnp.maximum(y, 0.0).astype(o_ref.dtype)


def _choose_tile(l_out, n_batch, c_in, c_out, k, out_itemsize, l_tile):
    """Lane tile (multiple of 128) capped by a conservative VMEM budget."""
    TL = min(_round_up(l_out, 128), max(128, (l_tile // 128) * 128))

    def vmem_bytes(tl):
        xm = 2 * c_in * tl * 2                               # double-buffered bf16 main
        xh = (2 * c_in * _HALO * 2) if k > 1 else 0          # double-buffered halo
        ob = 2 * c_out * tl * out_itemsize                   # double-buffered output
        wt = c_out * k * c_in * 2 + c_out * 4                # resident weight + shift
        return xm + xh + ob + wt

    budget = 20 * 2**20  # safe for v5e/v6e (128 MiB) and v7x (64 MiB per TC)
    while TL > 128 and vmem_bytes(TL) > budget:
        TL -= 128

    # v7x has 2 TensorCores; keep >= 2 "parallel" grid tiles when the batch is 1.
    if n_batch == 1 and pl.cdiv(l_out, TL) < 2 and l_out > 128:
        TL = max(128, _round_up(pl.cdiv(l_out, 2), 128))
    return TL


def _fused_conv(x_eff, w_eff, shift, K, l_out, out_dtype, l_tile, fuse_taps):
    """Stride-1 conv + shift + ReLU.

    x_eff: (N, C_in, L_in)       conv-padded, compute dtype (bf16)
    w_eff: (C_out, K*C_in) if fuse_taps else (K, C_out, C_in), BN-scale folded, bf16
    shift: (C_out,) f32
    Returns (N, C_out, l_out) in out_dtype.
    """
    N, C_in, L_in = x_eff.shape
    C_out = w_eff.shape[0] if fuse_taps else w_eff.shape[1]
    assert K - 1 <= _HALO
    out_itemsize = jnp.dtype(out_dtype).itemsize

    TL = _choose_tile(l_out, N, C_in, C_out, K, out_itemsize, l_tile)
    J = pl.cdiv(l_out, TL)

    # Pad x so every main + halo input block is fully in-bounds. The pad / bf16 cast is
    # allowed to fuse into the pallas_call operand DMA (allow_input_fusion below).
    L_need = J * TL + (_HALO if K > 1 else 0)
    if L_in < L_need:
        x_eff = jnp.pad(x_eff, ((0, 0), (0, 0), (0, L_need - L_in)))

    shift2 = shift.reshape(C_out, 1).astype(jnp.float32)
    tlb = TL // _HALO                                        # tile width in 128-col blocks

    in_specs = [pl.BlockSpec((None, C_in, TL), lambda n, j: (n, 0, j))]
    operands = [x_eff]
    fusion_ok = [True]
    if K > 1:
        # 128-column right halo (same array, next halo-block).
        in_specs.append(
            pl.BlockSpec((None, C_in, _HALO), lambda n, j: (n, 0, (j + 1) * tlb)))
        operands.append(x_eff)
        fusion_ok.append(True)
    if fuse_taps:
        in_specs.append(pl.BlockSpec((C_out, K * C_in), lambda n, j: (0, 0)))
    else:
        in_specs.append(pl.BlockSpec((K, C_out, C_in), lambda n, j: (0, 0, 0)))
    in_specs.append(pl.BlockSpec((C_out, 1), lambda n, j: (0, 0)))
    operands += [w_eff, shift2]
    fusion_ok += [False, False]

    flops = 2 * N * l_out * C_out * K * C_in
    bytes_accessed = (N * J * C_in * TL * 2
                      + (N * J * C_in * _HALO * 2 if K > 1 else 0)
                      + C_out * K * C_in * 2 + C_out * 4
                      + N * C_out * l_out * out_itemsize)

    kernel = functools.partial(_conv_bn_relu_kernel, K=K, fuse_taps=fuse_taps)

    return pl.pallas_call(
        kernel,
        out_shape=jax.ShapeDtypeStruct((N, C_out, l_out), out_dtype),
        grid_spec=pltpu.PrefetchScalarGridSpec(
            num_scalar_prefetch=0,
            grid=(N, J),
            in_specs=in_specs,
            out_specs=pl.BlockSpec((None, C_out, TL), lambda n, j: (n, 0, j)),
        ),
        compiler_params=pltpu.CompilerParams(
            dimension_semantics=("parallel", "parallel"),
            vmem_limit_bytes=32 * 2**20,
            allow_input_fusion=fusion_ok,
        ),
        cost_estimate=pl.CostEstimate(
            flops=flops, transcendentals=0, bytes_accessed=bytes_accessed),
    )(*operands)


def basic_conv1d(x, weight, gamma, beta, running_mean, running_var,
                 *, stride=1, padding=0, eps=1e-3,
                 compute_dtype=jnp.bfloat16, l_tile=1024, out_dtype=None):
    """Forward of BasicConv1d (inference / eval-mode BatchNorm).

    x:      (N, C_in, L)      float32
    weight: (C_out, C_in, K)  float32 (Conv1d weight, bias=False)
    gamma, beta, running_mean, running_var: (C_out,)
    returns (N, C_out, L_out); dtype = x.dtype unless out_dtype is given
            (pass jnp.bfloat16 if the downstream layer consumes bf16).
    """
    N, C_in, L = x.shape
    C_out, _, K = weight.shape
    L_out = (L + 2 * padding - K) // stride + 1
    out_dtype = x.dtype if out_dtype is None else out_dtype

    # Eval-mode BN folded: scale into the conv weight (exact, in f32), shift as a bias.
    scale = gamma / jnp.sqrt(running_var + eps)              # (C_out,)
    shift = beta - running_mean * scale                      # (C_out,)
    w_scaled = weight * scale[:, None, None]                 # (C_out, C_in, K) f32

    x_pad = jnp.pad(x, ((0, 0), (0, 0), (padding, padding)))

    if stride == 1:
        x_eff = x_pad.astype(compute_dtype)                  # (N, C_in, L + 2p)
        K_eff, Cin_eff = K, C_in
    else:
        # TODO(synk): stride > 1 keeps a host-side per-tap gather; the kernel then runs
        # it as a stride-1, single-tap conv with C_in*K channels.
        cols = (jnp.arange(L_out) * stride)[None, :] + jnp.arange(K)[:, None]  # (K, L_out)
        x_taps = x_pad[:, :, cols]                           # (N, C_in, K, L_out)
        x_eff = x_taps.reshape(N, C_in * K, L_out).astype(compute_dtype)
        K_eff, Cin_eff = 1, C_in * K

    # Fuse the K taps into one wide-contraction matmul when C_in underfills the MXU and
    # the tap stacking is sublane-aligned; otherwise keep the K-dot loop.
    fuse_taps = (K_eff == 1) or (Cin_eff % 16 == 0 and Cin_eff <= 256)

    if fuse_taps:
        if stride == 1:
            # column index = k*C_in + c  (matches the in-kernel tap stacking)
            w_eff = jnp.transpose(w_scaled, (0, 2, 1)).reshape(C_out, K * C_in)
        else:
            # column index = c*K + k     (matches the host im2col channel order)
            w_eff = w_scaled.reshape(C_out, C_in * K)
        w_eff = w_eff.astype(compute_dtype)                  # (C_out, K_eff*Cin_eff)
    else:
        w_eff = jnp.transpose(w_scaled, (2, 0, 1)).astype(compute_dtype)  # (K, C_out, C_in)

    return _fused_conv(x_eff, w_eff, shift, K_eff, L_out, out_dtype, l_tile, fuse_taps)


if __name__ == "__main__":
    key = jax.random.PRNGKey(0)

    def run_case(case_key, N, C_in, L, C_out, K, stride, padding):
        kx, kw, kg, kb, km, kv = jax.random.split(case_key, 6)
        x = jax.random.normal(kx, (N, C_in, L), dtype=jnp.float32)
        weight = 0.1 * jax.random.normal(kw, (C_out, C_in, K), dtype=jnp.float32)
        gamma = 1.0 + 0.1 * jax.random.normal(kg, (C_out,), dtype=jnp.float32)
        beta = 0.1 * jax.random.normal(kb, (C_out,), dtype=jnp.float32)
        mean = 0.1 * jax.random.normal(km, (C_out,), dtype=jnp.float32)
        var = jnp.abs(1.0 + 0.1 * jax.random.normal(kv, (C_out,), dtype=jnp.float32))

        out = basic_conv1d(x, weight, gamma, beta, mean, var,
                           stride=stride, padding=padding, eps=1e-3)
        out = jax.block_until_ready(out)

        # Pure-JAX f32 reference (Conv1d + eval BN + ReLU).
        conv = jax.lax.conv_general_dilated(
            x, weight, window_strides=(stride,), padding=[(padding, padding)],
            dimension_numbers=("NCH", "OIH", "NCH"))
        scale = gamma / jnp.sqrt(var + 1e-3)
        shift = beta - mean * scale
        ref = jnp.maximum(conv * scale[None, :, None] + shift[None, :, None], 0.0)

        assert out.shape == ref.shape, (out.shape, ref.shape)
        max_err = float(jnp.max(jnp.abs(out - ref)))
        # bf16 MXU operands -> tolerance looser than pure f32.
        assert jnp.allclose(out, ref, atol=5e-2, rtol=5e-2), (stride, padding, max_err)

    keys = jax.random.split(key, 3)
    # fused-tap single-matmul path (C_in multiple of 16):
    run_case(keys[0], 2, 16, 16, 8, 3, 1, 1)
    # K-dot loop path (small unaligned C_in):
    run_case(keys[1], 2, 4, 16, 8, 3, 1, 1)
    # strided path (reduces to single-tap conv, no halo DMA):
    run_case(keys[2], 2, 4, 16, 8, 3, 2, 1)

    print("KERNEL_OK")
</pallas_src>

<mosaic_0001>
module attributes {stable_mosaic.version = 11 : i64} {
  func.func @_conv_bn_relu_kernel(%arg0: i32, %arg1: i32, %arg2: memref<1x16x128xbf16, #tpu.memory_space<vmem>>, %arg3: memref<1x16x128xbf16, #tpu.memory_space<vmem>>, %arg4: memref<8x48xbf16, #tpu.memory_space<vmem>>, %arg5: memref<8x1xf32, #tpu.memory_space<vmem>>, %arg6: memref<1x8x128xf32, #tpu.memory_space<vmem>>) attributes {dimension_semantics = [#tpu.dimension_semantics<parallel>, #tpu.dimension_semantics<parallel>], iteration_bounds = array<i64: 2, 1>, scalar_prefetch = 0 : i64, scratch_operands = 0 : i64, tpu.core_type = #tpu.core_type<tc>, window_params = [{transform_indices = @transform_0, window_bounds = array<i64: 1, 16, 128>}, {transform_indices = @transform_1, window_bounds = array<i64: 1, 16, 128>}, {pipeline_mode = #tpu.pipeline_mode<synchronous>, transform_indices = @transform_2, window_bounds = array<i64: 8, 48>}, {pipeline_mode = #tpu.pipeline_mode<synchronous>, transform_indices = @transform_3, window_bounds = array<i64: 8, 1>}, {transform_indices = @transform_4, window_bounds = array<i64: 1, 8, 128>}]} {
    %c0 = arith.constant 0 : index
    %c0_0 = arith.constant 0 : index
    %c0_1 = arith.constant 0 : index
    %0 = vector.load %arg2[%c0, %c0_0, %c0_1] : memref<1x16x128xbf16, #tpu.memory_space<vmem>>, vector<1x16x128xbf16>
    %1 = vector.shape_cast %0 : vector<1x16x128xbf16> to vector<16x128xbf16>
    %c0_2 = arith.constant 0 : index
    %c0_3 = arith.constant 0 : index
    %c0_4 = arith.constant 0 : index
    %2 = vector.load %arg3[%c0_2, %c0_3, %c0_4] : memref<1x16x128xbf16, #tpu.memory_space<vmem>>, vector<1x16x128xbf16>
    %3 = vector.shape_cast %2 : vector<1x16x128xbf16> to vector<16x128xbf16>
    %4 = tpu.concatenate %1, %3 in 1 : vector<16x128xbf16>, vector<16x128xbf16> -> vector<16x256xbf16>
    %5 = vector.extract_strided_slice %4 {offsets = [0, 0], sizes = [16, 128], strides = [1, 1]} : vector<16x256xbf16> to vector<16x128xbf16>
    %6 = vector.extract_strided_slice %4 {offsets = [0, 1], sizes = [16, 128], strides = [1, 1]} : vector<16x256xbf16> to vector<16x128xbf16>
    %7 = vector.extract_strided_slice %4 {offsets = [0, 2], sizes = [16, 128], strides = [1, 1]} : vector<16x256xbf16> to vector<16x128xbf16>
    %8 = tpu.concatenate %5, %6, %7 in 0 : vector<16x128xbf16>, vector<16x128xbf16>, vector<16x128xbf16> -> vector<48x128xbf16>
    %c0_5 = arith.constant 0 : index
    %c0_6 = arith.constant 0 : index
    %9 = vector.load %arg4[%c0_5, %c0_6] : memref<8x48xbf16, #tpu.memory_space<vmem>>, vector<8x48xbf16>
    %cst = arith.constant dense<0.000000e+00> : vector<8x128xf32>
    %10 = tpu.matmul %9, %8, %cst {dimension_numbers = #tpu.dot_dimension_numbers<[1], [0], [0], [1], [0, 0, 1, 1], [], []>} : vector<8x48xbf16>, vector<48x128xbf16>, vector<8x128xf32> -> vector<8x128xf32>
    %c0_7 = arith.constant 0 : index
    %c0_8 = arith.constant 0 : index
    %11 = vector.load %arg5[%c0_7, %c0_8] : memref<8x1xf32, #tpu.memory_space<vmem>>, vector<8x1xf32>
    %12 = vector.broadcast %11 : vector<8x1xf32> to vector<8x128xf32>
    %13 = arith.addf %10, %12 : vector<8x128xf32>
    %cst_9 = arith.constant 0.000000e+00 : f32
    %14 = vector.broadcast %cst_9 : f32 to vector<8x128xf32>
    %15 = arith.maximumf %13, %14 : vector<8x128xf32>
    %c0_10 = arith.constant 0 : index
    %c0_11 = arith.constant 0 : index
    %c0_12 = arith.constant 0 : index
    %16 = vector.load %arg6[%c0_10, %c0_11, %c0_12] : memref<1x8x128xf32, #tpu.memory_space<vmem>>, vector<1x8x128xf32>
    %17 = vector.shape_cast %16 : vector<1x8x128xf32> to vector<8x128xf32>
    %18 = vector.shape_cast %15 : vector<8x128xf32> to vector<1x8x128xf32>
    tpu.vector_store %arg6[%c0_10, %c0_11, %c0_12], %18 {strides = array<i32>} : memref<1x8x128xf32, #tpu.memory_space<vmem>>, vector<1x8x128xf32>,
    return
  }
  func.func @transform_0(%arg0: i32, %arg1: i32) -> (i32, i32, i32) {
    %c0_i32 = arith.constant 0 : i32
    %c0_i32_0 = arith.constant 0 : i32
    return %arg0, %c0_i32, %arg1 : i32, i32, i32
  }
  func.func @transform_1(%arg0: i32, %arg1: i32) -> (i32, i32, i32) {
    %c1_i32 = arith.constant 1 : i32
    %0 = arith.addi %arg1, %c1_i32 : i32
    %c1_i32_0 = arith.constant 1 : i32
    %1 = arith.muli %0, %c1_i32_0 : i32
    %c0_i32 = arith.constant 0 : i32
    %c0_i32_1 = arith.constant 0 : i32
    return %arg0, %c0_i32, %1 : i32, i32, i32
  }
  func.func @transform_2(%arg0: i32, %arg1: i32) -> (i32, i32) {
    %c0_i32 = arith.constant 0 : i32
    %c0_i32_0 = arith.constant 0 : i32
    %c0_i32_1 = arith.constant 0 : i32
    return %c0_i32, %c0_i32_0 : i32, i32
  }
  func.func @transform_3(%arg0: i32, %arg1: i32) -> (i32, i32) {
    %c0_i32 = arith.constant 0 : i32
    %c0_i32_0 = arith.constant 0 : i32
    %c0_i32_1 = arith.constant 0 : i32
    return %c0_i32, %c0_i32_0 : i32, i32
  }
  func.func @transform_4(%arg0: i32, %arg1: i32) -> (i32, i32, i32) {
    %c0_i32 = arith.constant 0 : i32
    %c0_i32_0 = arith.constant 0 : i32
    return %arg0, %c0_i32, %arg1 : i32, i32, i32
  }
}

</mosaic_0001>

<llo_original>
// kernel: tpu_custom_call.1
$region0: #{tpu_custom_call.1}
  #allocation0 [shape = 'u32[]', space=smem, size = 0x4, offset = 0x4, fixed_abs, tag = 'smem constant byte address 0x4 - core index']
  #allocation1 [shape = 'u32[144,128]{1,0:T(1,128)}', space=vmem, size = 0x12000, scoped, tag = 'internal scratch']
  %s0 = inlined_call_operand.hbm [shape: bf16[2,16,256], index: 0, kind: input, shape index: {}]
  %s1 = inlined_call_operand.hbm [shape: bf16[2,16,256], index: 1, kind: input, shape index: {}]
  %s2 = inlined_call_operand.vmem [shape: bf16[8,48], index: 2, kind: input, shape index: {}]
  %s3 = inlined_call_operand.vmem [shape: f32[8,1], index: 3, kind: input, shape index: {}]
  %s4 = inlined_call_operand.hbm [shape: f32[2,8,16], index: 4, kind: output, shape index: {}]
  %s5 = sld [smem:[#allocation0]]
  $region57: #{tpu_custom_call.1} parent=0
    _
  %s7 = ssub.s32 1, %s5
  %s8 = scalar_select 0, %s7, %s5
  $region1: #{tpu_custom_call.1} parent=0
    #allocation2 [shape = 'u8[8192]{0}', space=vmem, size = 0x2000, scoped, tag = 'input window, operand 0']
    #allocation3 [shape = 's32[2]{0}', space=sflag, size = 0x8, scoped, tag = 'scoped memory for tpu_custom_call.1']
    #allocation4 [shape = 's32[2]{0}', space=sflag, size = 0x8, scoped, tag = 'scoped memory for tpu_custom_call.1']
    #allocation5 [shape = 'u8[8192]{0}', space=vmem, size = 0x2000, scoped, tag = 'input window, operand 1']
    #allocation6 [shape = 's32[2]{0}', space=sflag, size = 0x8, scoped, tag = 'scoped memory for tpu_custom_call.1']
    #allocation7 [shape = 'u8[8192]{0}', space=vmem, size = 0x2000, scoped, tag = 'output window, operand 0']
    %9 = vsyncpa [#allocation3], 0
    %s10 = scalar_lea.sflag [#allocation3], 1
    %11 = vsyncpa %s10, 0
    %12 = vsyncpa [#allocation6], 0
    %s13 = scalar_lea.sflag [#allocation6], 1
    %14 = vsyncpa %s13, 0
    %15 = vsyncpa [#allocation4], 0
    %s16 = scalar_lea.sflag [#allocation4], 1
    %17 = vsyncpa %s16, 0
    loop: start=0, step=1, limit=4
    $region2: #{tpu_custom_call.1} parent=1 // loop_pre_header
      _
    $region3: #{tpu_custom_call.1} parent=1 // loop_header
      %s19 = sphi 0, %s23
      %p20 = scmp.ge.s32.totalorder %s19, 4
      %s26 = sphi 0, %s38
      %s27 = sphi 0, %s34
      %s28 = sphi 0, %s26
      %s29 = sphi 0, %s27
      %s30 = sphi 0, %s28
      %s31 = sphi 0, %s29
      %s43 = sphi 0, %s45
      %s46 = sphi 0, %s43
      %s47 = sphi 0, %s46
      %s63 = sphi 0, %s47
      %s73 = sphi 0, %s75
      %s76 = sphi 0, %s73
      %s77 = sphi 0, %s76
      %s93 = sphi 0, %s77
      %s97 = sphi 0, %s97
      %s99 = sphi 0, %s97
      %s100 = sphi 0, %s99
      %s114 = sphi 0, %s100
      %s118 = sphi 0, %s118
      %s120 = sphi 0, %s118
      %s121 = sphi 0, %s120
      %s135 = sphi 0, %s121
      %s143 = sphi 0, %s145
      %s146 = sphi 0, %s143
      %s147 = sphi 0, %s146
      %s163 = sphi 0, %s147
    $region4: #{tpu_custom_call.1} parent=1 // loop_header_branch
      %22 = sbr.rel (%p20) target = $region8
    $region5: #{tpu_custom_call.1} parent=1 // loop_body
      %s24 = ssub.s32 %s19, 1
      %s25 = ssub.s32 %s19, 2
      %s32 = sadd.s32 1, %s27
      %p33 = scmp.ge.s32.totalorder %s32, 1
      %s34 = scalar_select %p33, 0, %s32
      %s35 = sadd.s32 1, %s26
      %s36 = scalar_select %p33, %s35, %s26
      %p37 = scmp.ge.s32.totalorder %s36, 2
      %s38 = scalar_select %p37, 0, %s36
      %s39 = ssub.s32 %s26, %s38
      %s40 = ssub.s32 %s27, %s34
      %s41 = sor.u32 %s39, %s40
      %p42 = scmp.eq.s32.totalorder %s41, 0
      %s44 = sadd.s32 %s43, 1
      %s45 = scalar_select %p42, %s43, %s44
      %p48 = pneg %p42
      %p49 = scmp.eq.s32.totalorder %s19, 1
      %p50 = por %p48, %p49
      %p51 = scmp.ne.s32.totalorder %s43, %s46
      %p52 = scmp.eq.s32.totalorder %s19, 0
      %p53 = por %p51, %p52
      %p54 = scmp.ne.s32.totalorder %s43, %s46
      %p55 = scmp.eq.s32.totalorder %s24, 1
      %p56 = por %p54, %p55
      %p57 = scmp.ne.s32.totalorder %s46, %s47
      %p58 = scmp.eq.s32.totalorder %s24, 0
      %p59 = por %p57, %p58
      %p60 = scmp.ne.s32.totalorder %s46, %s47
      %p61 = scmp.eq.s32.totalorder %s25, 1
      %p62 = por %p60, %p61
      %p64 = scmp.ne.s32.totalorder %s47, %s63
      %p65 = scmp.eq.s32.totalorder %s25, 0
      %p66 = por %p64, %p65
      %s67 = sadd.s32 %s27, 1
      %s68 = sadd.s32 %s34, 1
      %s69 = ssub.s32 %s26, %s38
      %s70 = ssub.s32 %s67, %s68
      %s71 = sor.u32 %s69, %s70
      %p72 = scmp.eq.s32.totalorder %s71, 0
      %s74 = sadd.s32 %s73, 1
      %s75 = scalar_select %p72, %s73, %s74
      %p78 = pneg %p72
      %p79 = scmp.eq.s32.totalorder %s19, 1
      %p80 = por %p78, %p79
      %p81 = scmp.ne.s32.totalorder %s73, %s76
      %p82 = scmp.eq.s32.totalorder %s19, 0
      %p83 = por %p81, %p82
      %p84 = scmp.ne.s32.totalorder %s73, %s76
      %p85 = scmp.eq.s32.totalorder %s24, 1
      %p86 = por %p84, %p85
      %p87 = scmp.ne.s32.totalorder %s76, %s77
      %p88 = scmp.eq.s32.totalorder %s24, 0
      %p89 = por %p87, %p88
      %p90 = scmp.ne.s32.totalorder %s76, %s77
      %p91 = scmp.eq.s32.totalorder %s25, 1
      %p92 = por %p90, %p91
      %p94 = scmp.ne.s32.totalorder %s77, %s93
      %p95 = scmp.eq.s32.totalorder %s25, 0
      %p96 = por %p94, %p95
      %s98 = sadd.s32 %s97, 1
      %p101 = scmp.eq.s32.totalorder %s19, 1
      %p102 = scmp.ne.s32.totalorder %s97, %s99
      %p103 = scmp.eq.s32.totalorder %s19, 0
      %p104 = por %p102, %p103
      %p105 = scmp.ne.s32.totalorder %s97, %s99
      %p106 = scmp.eq.s32.totalorder %s24, 1
      %p107 = por %p105, %p106
      %p108 = scmp.ne.s32.totalorder %s99, %s100
      %p109 = scmp.eq.s32.totalorder %s24, 0
      %p110 = por %p108, %p109
      %p111 = scmp.ne.s32.totalorder %s99, %s100
      %p112 = scmp.eq.s32.totalorder %s25, 1
      %p113 = por %p111, %p112
      %p115 = scmp.ne.s32.totalorder %s100, %s114
      %p116 = scmp.eq.s32.totalorder %s25, 0
      %p117 = por %p115, %p116
      %s119 = sadd.s32 %s118, 1
      %p122 = scmp.eq.s32.totalorder %s19, 1
      %p123 = scmp.ne.s32.totalorder %s118, %s120
      %p124 = scmp.eq.s32.totalorder %s19, 0
      %p125 = por %p123, %p124
      %p126 = scmp.ne.s32.totalorder %s118, %s120
      %p127 = scmp.eq.s32.totalorder %s24, 1
      %p128 = por %p126, %p127
      %p129 = scmp.ne.s32.totalorder %s120, %s121
      %p130 = scmp.eq.s32.totalorder %s24, 0
      %p131 = por %p129, %p130
      %p132 = scmp.ne.s32.totalorder %s120, %s121
      %p133 = scmp.eq.s32.totalorder %s25, 1
      %p134 = por %p132, %p133
      %p136 = scmp.ne.s32.totalorder %s121, %s135
      %p137 = scmp.eq.s32.totalorder %s25, 0
      %p138 = por %p136, %p137
      %s139 = ssub.s32 %s26, %s38
      %s140 = ssub.s32 %s27, %s34
      %s141 = sor.u32 %s139, %s140
      %p142 = scmp.eq.s32.totalorder %s141, 0
      %s144 = sadd.s32 %s143, 1
      %s145 = scalar_select %p142, %s143, %s144
      %p148 = pneg %p142
      %p149 = scmp.eq.s32.totalorder %s19, 1
      %p150 = por %p148, %p149
      %p151 = scmp.ne.s32.totalorder %s143, %s146
      %p152 = scmp.eq.s32.totalorder %s19, 0
      %p153 = por %p151, %p152
      %p154 = scmp.ne.s32.totalorder %s143, %s146
      %p155 = scmp.eq.s32.totalorder %s24, 1
      %p156 = por %p154, %p155
      %p157 = scmp.ne.s32.totalorder %s146, %s147
      %p158 = scmp.eq.s32.totalorder %s24, 0
      %p159 = por %p157, %p158
      %p160 = scmp.ne.s32.totalorder %s146, %s147
      %p161 = scmp.eq.s32.totalorder %s25, 1
      %p162 = por %p160, %p161
      %p164 = scmp.ne.s32.totalorder %s147, %s163
      %p165 = scmp.eq.s32.totalorder %s25, 0
      %p166 = por %p164, %p165
      %p167 = scmp.le.s32.totalorder 1, %s19
      %p168 = scmp.lt.s32.totalorder %s19, 3
      %p169 = pnand %p167, %p168
      %p170 = pneg %p169
      // Predicated region
      $region9: #{tpu_custom_call.1} parent=5 // pred_check
        _
      $region10: #{tpu_custom_call.1} parent=5 // pred_check_branch
        %172 = sbr.rel (%p169) target = $region12
      $region11: #{tpu_custom_call.1} parent=5 // pred_region
        %s173 = ssub.s32 %s19, 1
        // Predicated region
        $region13: #{tpu_custom_call.1} parent=11 // pred_check
          %p174 = pneg %p110
        $region14: #{tpu_custom_call.1} parent=11 // pred_check_branch
          %176 = sbr.rel (%p174) target = $region16
        $region15: #{tpu_custom_call.1} parent=11 // pred_region
          _
        $region16: #{tpu_custom_call.1} parent=11 // pred_fallthru
          _
        // Predicated region
        $region17: #{tpu_custom_call.1} parent=11 // pred_check
          %p177 = pneg %p131
        $region18: #{tpu_custom_call.1} parent=11 // pred_check_branch
          %179 = sbr.rel (%p177) target = $region20
        $region19: #{tpu_custom_call.1} parent=11 // pred_region
          _
        $region20: #{tpu_custom_call.1} parent=11 // pred_fallthru
          _
      $region12: #{tpu_custom_call.1} parent=5 // pred_fallthru
        _
      %p180 = scmp.lt.s32.totalorder %s19, 2
      // Predicated region
      $region21: #{tpu_custom_call.1} parent=5 // pred_check
        %p181 = pneg %p180
      $region22: #{tpu_custom_call.1} parent=5 // pred_check_branch
        %183 = sbr.rel (%p181) target = $region24
      $region23: #{tpu_custom_call.1} parent=5 // pred_region
        // Predicated region
        $region25: #{tpu_custom_call.1} parent=23 // pred_check
          %p184 = pneg %p53
        $region26: #{tpu_custom_call.1} parent=23 // pred_check_branch
          %186 = sbr.rel (%p184) target = $region28
        $region27: #{tpu_custom_call.1} parent=23 // pred_region
          %s187 = sand.u32 %s43, 1
          %s188 = scalar_lea.sflag [#allocation3], %s187
          %s189 = sand.u32 %s43, 1
          %s190 = smul.addr %s189, 8
          %s191 = scalar_lea.vmem [#allocation2], %s190
          %s193 = ssub.s32 128, 128
          %194 = vsyncadd %s188, %s193
          %s195 = smul.addr %s26, 4
          %s196 = sadd.s32 %s27, %s195
          %s197 = smul.addr %s196, 64
          %s198 = scalar_lea.hbm %s0, %s197
          %s199 = sshll.u32 %s191, 4
          %s200 = int_to_ptr.vmem [resolvable:$true] %s199
          %205 = dma.hbm_to_vmem [thread:$0]  %s198, 128, %s200, %s188, 128, 64, 4
        $region28: #{tpu_custom_call.1} parent=23 // pred_fallthru
          _
        // Predicated region
        $region29: #{tpu_custom_call.1} parent=23 // pred_check
          %p206 = pneg %p83
        $region30: #{tpu_custom_call.1} parent=23 // pred_check_branch
          %208 = sbr.rel (%p206) target = $region32
        $region31: #{tpu_custom_call.1} parent=23 // pred_region
          %s209 = sand.u32 %s73, 1
          %s210 = scalar_lea.sflag [#allocation6], %s209
          %s211 = sand.u32 %s73, 1
          %s212 = smul.addr %s211, 8
          %s213 = scalar_lea.vmem [#allocation5], %s212
          %s214 = sadd.s32 %s27, 1
          %s216 = ssub.s32 128, 128
          %217 = vsyncadd %s210, %s216
          %s218 = smul.addr %s26, 4
          %s219 = sadd.s32 %s214, %s218
          %s220 = smul.addr %s219, 64
          %s221 = scalar_lea.hbm %s1, %s220
          %s222 = sshll.u32 %s213, 4
          %s223 = int_to_ptr.vmem [resolvable:$true] %s222
          %228 = dma.hbm_to_vmem [thread:$0]  %s221, 128, %s223, %s210, 128, 64, 4
        $region32: #{tpu_custom_call.1} parent=23 // pred_fallthru
          _
      $region24: #{tpu_custom_call.1} parent=5 // pred_fallthru
        _
      %p229 = scmp.le.s32.totalorder 1, %s19
      %p230 = scmp.lt.s32.totalorder %s19, 3
      %p231 = pnand %p229, %p230
      %p232 = pneg %p231
      // Predicated region
      $region33: #{tpu_custom_call.1} parent=5 // pred_check
        _
      $region34: #{tpu_custom_call.1} parent=5 // pred_check_branch
        %234 = sbr.rel (%p231) target = $region36
      $region35: #{tpu_custom_call.1} parent=5 // pred_region
        %s235 = ssub.s32 %s19, 1
        %s236 = sand.u32 %s46, 1
        %s237 = scalar_lea.sflag [#allocation3], %s236
        %s238 = sand.u32 %s46, 1
        %s239 = smul.addr %s238, 8
        %s240 = scalar_lea.vmem [#allocation2], %s239
        // Predicated region
        $region37: #{tpu_custom_call.1} parent=35 // pred_check
          %p241 = pneg %p59
        $region38: #{tpu_custom_call.1} parent=35 // pred_check_branch
          %243 = sbr.rel (%p241) target = $region40
        $region39: #{tpu_custom_call.1} parent=35 // pred_region
          %244 = dma.done %s237, 128
        $region40: #{tpu_custom_call.1} parent=35 // pred_fallthru
          _
        %s245 = sand.u32 %s76, 1
        %s246 = scalar_lea.sflag [#allocation6], %s245
        %s247 = sand.u32 %s76, 1
        %s248 = smul.addr %s247, 8
        %s249 = scalar_lea.vmem [#allocation5], %s248
        // Predicated region
        $region41: #{tpu_custom_call.1} parent=35 // pred_check
          %p250 = pneg %p89
        $region42: #{tpu_custom_call.1} parent=35 // pred_check_branch
          %252 = sbr.rel (%p250) target = $region44
        $region43: #{tpu_custom_call.1} parent=35 // pred_region
          %253 = dma.done %s246, 128
        $region44: #{tpu_custom_call.1} parent=35 // pred_fallthru
          _
        %s254 = sand.u32 %s46, 1
        %s255 = scalar_lea.sflag [#allocation3], %s254
        %s256 = sand.u32 %s46, 1
        %s257 = smul.addr %s256, 8
        %s258 = scalar_lea.vmem [#allocation2], %s257
        %p259 = pneg %p59
        %p260 = pneg %p56
        %s261 = sand.u32 %s76, 1
        %s262 = scalar_lea.sflag [#allocation6], %s261
        %s263 = sand.u32 %s76, 1
        %s264 = smul.addr %s263, 8
        %s265 = scalar_lea.vmem [#allocation5], %s264
        %p266 = pneg %p89
        %p267 = pneg %p86
        %p268 = pneg %p110
        %p269 = pneg %p107
        %p270 = pneg %p131
        %p271 = pneg %p128
        %p272 = pneg %p159
        %p273 = pneg %p156
        %s274 = sand.u32 %s146, 1
        %s275 = scalar_lea.sflag [#allocation4], %s274
        %s276 = sand.u32 %s146, 1
        %s277 = smul.addr %s276, 8
        %s278 = scalar_lea.vmem [#allocation7], %s277
        %s279 = sadd.s32 %s29, 1
        %v281 = vld [vmem:[%s240] sm:$0xf]
        %v282 = vld [vmem:[%s240 + $0x4] sm:$0xf]
        %v283 = vld [vmem:[%s249] sm:$0xf]
        %v284 = vld [vmem:[%s249 + $0x4] sm:$0xf]
        %v287 = vunpack.c.l.b16 %v281
        %v288 = vunpack.c.l.b16 %v282
        %v289 = vpack.c.b16 %v288, %v287
        %v293 = vunpack.c.l.b16 %v283
        %v294 = vunpack.c.l.b16 %v284
        %v295 = vpack.c.b16 %v294, %v293
        %296 = vrot.lane.b32.xlu0 %v289, 127
        %v297 = vpop.permute.xlu0 %296
        %298 = vrot.lane.b32.xlu0 %v295, 127
        %v299 = vpop.permute.xlu0 %298
        %vm300 = vcmask 1039360
        %v301 = vsel %vm300, %v297, %v299
        %303 = vrot.lane.b32.xlu0 %v289, 126
        %v304 = vpop.permute.xlu0 %303
        %305 = vrot.lane.b32.xlu0 %v295, 126
        %v306 = vpop.permute.xlu0 %305
        %vm307 = vcmask 1031168
        %v308 = vsel %vm307, %v304, %v306
        %v310 = vld [vmem:[%s2] sm:$0xf]
        %v311 = vld [vmem:[%s3] sm:$0xff]
        %313 = vset.pattern.permute.xlu0 0
        %314 = vperm.xlu0 %313, %v311
        %v315 = vpop.permute.xlu0 %314
        %vm317 = vcmask 392192
        %v319 = vsel %vm317, %v310, 0
        %321 = vmatprep.subr.bf16.mxu0 0
        %322 = vmatpush1.bf16.msra.mxu0 %v289
        %323 = vmatprep.subr.bf16.mxu0 0
        %324 = vmatpush1.bf16.msra.mxu0 %v301
        %325 = vmatprep.subr.bf16.mxu0 0
        %326 = vmatpush1.bf16.msra.mxu0 %v308
        %327 = vmatprep.subr.bf16.mxu0 0
        %328 = vmatpush1.bf16.msra.mxu0 0
        %329 = vmatprep.subr.bf16.mxu0 0
        %330 = vmatpush1.bf16.msra.mxu0 0
        %331 = vmatprep.subr.bf16.mxu0 0
        %332 = vmatpush1.bf16.msra.mxu0 0
        %333 = vmatprep.subr.bf16.mxu0 0
        %334 = vmatpush1.bf16.msra.mxu0 0
        %335 = vmatprep.subr.bf16.mxu0 0
        %336 = vmatpush1.bf16.msra.mxu0 0
        %337 = vmatprep.subr.bf16.mxu0 0
        %338 = vmatpush1.bf16.msra.mxu0 0
        %339 = vmatprep.subr.bf16.mxu0 0
        %340 = vmatpush1.bf16.msra.mxu0 0
        %341 = vmatprep.subr.bf16.mxu0 0
        %342 = vmatpush1.bf16.msra.mxu0 0
        %343 = vmatprep.subr.bf16.mxu0 0
        %344 = vmatpush1.bf16.msra.mxu0 0
        %345 = vmatprep.subr.bf16.mxu0 0
        %346 = vmatpush1.bf16.msra.mxu0 0
        %347 = vmatprep.subr.bf16.mxu0 0
        %348 = vmatpush1.bf16.msra.mxu0 0
        %349 = vmatprep.subr.bf16.mxu0 0
        %350 = vmatpush1.bf16.msra.mxu0 0
        %351 = vmatprep.subr.bf16.mxu0 0
        %352 = vmatpush1.bf16.msra.mxu0 0
        %353 = vmatprep.mubr.bf16.mxu0 0
        %354 = vmatmul.mubr.bf16.gmra.mrb[0].mxu0 %v319
        %v355 = vpop.f32.mrb[0].mxu0
        %v356 = vadd.f32 %v315, %v355
        %v357 = vpop.f32.mrb[0].mxu0
        %v358 = vpop.f32.mrb[0].mxu0
        %v359 = vpop.f32.mrb[0].mxu0
        %360 = vdwg.mxu0
        %v361 = vmax.f32 %v356, 0.0
        %362 = vst [vmem:[%s278] sm:$0xff] %v361
        %s363 = sand.u32 %s146, 1
        %s364 = scalar_lea.sflag [#allocation4], %s363
        %s365 = sand.u32 %s146, 1
        %s366 = smul.addr %s365, 8
        %s367 = scalar_lea.vmem [#allocation7], %s366
        // Predicated region
        $region45: #{tpu_custom_call.1} parent=35 // pred_check
          %p368 = pneg %p156
        $region46: #{tpu_custom_call.1} parent=35 // pred_check_branch
          %370 = sbr.rel (%p368) target = $region48
        $region47: #{tpu_custom_call.1} parent=35 // pred_region
          %s372 = ssub.s32 128, 128
          %373 = vsyncadd %s364, %s372
          %s374 = sadd.s32 %s29, %s28
          %s375 = smul.addr %s374, 128
          %s376 = scalar_lea.hbm %s4, %s375
          %s378 = sshll.u32 %s367, 4
          %s379 = int_to_ptr.vmem [resolvable:$true] %s378
          %381 = dma.vmem_to_hbm [thread:$0]  %s379, 128, %s376, %s364
        $region48: #{tpu_custom_call.1} parent=35 // pred_fallthru
          _
      $region36: #{tpu_custom_call.1} parent=5 // pred_fallthru
        _
      %p382 = scmp.le.s32.totalorder 2, %s19
      // Predicated region
      $region49: #{tpu_custom_call.1} parent=5 // pred_check
        %p383 = pneg %p382
      $region50: #{tpu_custom_call.1} parent=5 // pred_check_branch
        %385 = sbr.rel (%p383) target = $region52
      $region51: #{tpu_custom_call.1} parent=5 // pred_region
        %s386 = ssub.s32 %s19, 2
        // Predicated region
        $region53: #{tpu_custom_call.1} parent=51 // pred_check
          %p387 = pneg %p162
        $region54: #{tpu_custom_call.1} parent=51 // pred_check_branch
          %389 = sbr.rel (%p387) target = $region56
        $region55: #{tpu_custom_call.1} parent=51 // pred_region
          %s390 = sand.u32 %s147, 1
          %s391 = scalar_lea.sflag [#allocation4], %s390
          %s392 = sand.u32 %s147, 1
          %s393 = smul.addr %s392, 8
          %s394 = scalar_lea.vmem [#allocation7], %s393
          %395 = dma.done %s391, 128
        $region56: #{tpu_custom_call.1} parent=51 // pred_fallthru
          _
      $region52: #{tpu_custom_call.1} parent=5 // pred_fallthru
        _
    $region6: #{tpu_custom_call.1} parent=1 // loop_footer
      %s23 = sadd.s32 1, %s19
    $region7: #{tpu_custom_call.1} parent=1 // loop_footer_branch
      %18 = sbr.rel target = $region3
    $region8: #{tpu_custom_call.1} parent=1 // loop_exit
      _
    %396 = vsyncpa [#allocation3], 1
    %s397 = scalar_lea.sflag [#allocation3], 1
    %398 = vsyncpa %s397, 1
    %399 = vsyncpa [#allocation6], 1
    %s400 = scalar_lea.sflag [#allocation6], 1
    %401 = vsyncpa %s400, 1
    %402 = vsyncpa [#allocation4], 1
    %s403 = scalar_lea.sflag [#allocation4], 1
    %404 = vsyncpa %s403, 1

</llo_original>
